<compile_context>
chip_gen: v7x
topology: tpu7x:2x2x1
jax: 0.10.0
libtpu: 0.0.40
codegen_flags: <defaults>
</compile_context>

<pallas_src>
import jax
import jax.numpy as jnp
from jax.experimental import pallas as pl
from jax.experimental.pallas import tpu as pltpu


def _round_up(x, m):
    return ((x + m - 1) // m) * m


def gmf_kernel(u_ref, i_ref, wu_ref, wi_ref, bu_ref, bi_ref, bp_ref, out_ref):
    # user / item projections (BN scale/shift and wp already folded into W / b).
    up = jnp.dot(u_ref[...], wu_ref[...],
                 preferred_element_type=jnp.float32) + bu_ref[...]
    ip = jnp.dot(i_ref[...], wi_ref[...],
                 preferred_element_type=jnp.float32) + bi_ref[...]
    prod = up * ip                                            # [tb, latent]
    # Predict layer: sum over latent as an MXU dot with a ones vector
    # (cheaper than a cross-lane XLU reduce), plus the scalar bias from SMEM.
    ones = jnp.ones((prod.shape[-1], 1), jnp.float32)
    logit = jnp.dot(prod, ones,
                    preferred_element_type=jnp.float32) + bp_ref[0, 0]
    out_ref[...] = jax.nn.sigmoid(logit).astype(out_ref.dtype)


def prepare_fused_params(params):
    """Fold eval-mode BatchNorm and the predict-layer weight into the Linears.

    Done once at parameter-preparation time (not per forward)."""
    su, shu, wu, bu = params["su"], params["shu"], params["wu"], params["bu"]
    si, shi, wi, bi = params["si"], params["shi"], params["wi"], params["bi"]
    wp, bp = params["wp"], params["bp"]

    # BN fold: (x*s + sh) @ W + b  ==  x @ (s[:,None]*W) + (sh @ W + b)
    wu_f = su.reshape(-1, 1) * wu
    bu_f = shu.reshape(1, -1) @ wu + bu
    wi_f = si.reshape(-1, 1) * wi
    bi_f = shi.reshape(1, -1) @ wi + bi

    # Fold wp into the user branch: (u*i) @ wp == sum_k (u_k*wp_k) * i_k
    wpv = wp.reshape(1, -1)
    wu_f = wu_f * wpv
    bu_f = bu_f * wpv

    return {
        "wu": wu_f.astype(jnp.float32),          # [user_dim, latent]
        "wi": wi_f.astype(jnp.float32),          # [item_dim, latent]
        "bu": bu_f.astype(jnp.float32),          # [1, latent]
        "bi": bi_f.astype(jnp.float32),          # [1, latent]
        "bp": jnp.asarray(bp, jnp.float32).reshape(1, 1),
    }


def gmf_forward(user, item, fused, *, tb=512):
    """user: [B, user_dim], item: [B, item_dim] -> sigmoid logits [B, 1]."""
    B, user_dim = user.shape
    item_dim = item.shape[1]
    latent = fused["wu"].shape[1]

    # Batch tile: multiple of 8, no larger than the (rounded-up) batch.
    tb = _round_up(min(tb, _round_up(B, 8)), 8)
    grid = (pl.cdiv(B, tb),)

    out = pl.pallas_call(
        gmf_kernel,
        out_shape=jax.ShapeDtypeStruct((B, 1), jnp.float32),
        grid_spec=pltpu.PrefetchScalarGridSpec(
            num_scalar_prefetch=0,
            grid=grid,
            in_specs=[
                pl.BlockSpec((tb, user_dim), lambda b: (b, 0)),       # user (streamed)
                pl.BlockSpec((tb, item_dim), lambda b: (b, 0)),       # item (streamed)
                pl.BlockSpec((user_dim, latent), lambda b: (0, 0)),   # folded Wu
                pl.BlockSpec((item_dim, latent), lambda b: (0, 0)),   # folded Wi
                pl.BlockSpec((1, latent), lambda b: (0, 0)),          # folded bu
                pl.BlockSpec((1, latent), lambda b: (0, 0)),          # folded bi
                pl.BlockSpec(memory_space=pltpu.MemorySpace.SMEM),    # bp scalar
            ],
            out_specs=pl.BlockSpec((tb, 1), lambda b: (b, 0)),
        ),
        compiler_params=pltpu.CompilerParams(
            dimension_semantics=("parallel",)),
    )(user, item, fused["wu"], fused["wi"], fused["bu"], fused["bi"], fused["bp"])

    return out


def init_params(key, user_dim, item_dim, latent_dim):
    ks = jax.random.split(key, 14)
    eps = 1e-5
    f32 = jnp.float32

    # BatchNorm1d(user_dim): gamma, beta, running_mean, running_var (eval mode)
    gamma_u = 1.0 + 0.1 * jax.random.normal(ks[0], (user_dim,), f32)
    beta_u = 0.1 * jax.random.normal(ks[1], (user_dim,), f32)
    mean_u = 0.1 * jax.random.normal(ks[2], (user_dim,), f32)
    var_u = jax.random.uniform(ks[3], (user_dim,), f32, 0.5, 1.5)
    su = gamma_u / jnp.sqrt(var_u + eps)
    shu = beta_u - mean_u * su

    # BatchNorm1d(item_dim)
    gamma_i = 1.0 + 0.1 * jax.random.normal(ks[4], (item_dim,), f32)
    beta_i = 0.1 * jax.random.normal(ks[5], (item_dim,), f32)
    mean_i = 0.1 * jax.random.normal(ks[6], (item_dim,), f32)
    var_i = jax.random.uniform(ks[7], (item_dim,), f32, 0.5, 1.5)
    si = gamma_i / jnp.sqrt(var_i + eps)
    shi = beta_i - mean_i * si

    # Linear layers (stored as [in, out], transposed from PyTorch [out, in])
    wu = jax.random.normal(ks[8], (user_dim, latent_dim), f32) / jnp.sqrt(user_dim)
    bu = 0.01 * jax.random.normal(ks[9], (latent_dim,), f32)
    wi = jax.random.normal(ks[10], (item_dim, latent_dim), f32) / jnp.sqrt(item_dim)
    bi = 0.01 * jax.random.normal(ks[11], (latent_dim,), f32)
    wp = jax.random.normal(ks[12], (latent_dim, 1), f32) / jnp.sqrt(latent_dim)
    bp = 0.01 * jax.random.normal(ks[13], (1,), f32)

    return {
        "su": su, "shu": shu, "wu": wu, "bu": bu.reshape(1, -1),
        "si": si, "shi": shi, "wi": wi, "bi": bi.reshape(1, -1),
        "wp": wp, "bp": bp,
    }


def gmf_reference(user, item, p):
    u = (user * p["su"] + p["shu"]) @ p["wu"] + p["bu"]
    i = (item * p["si"] + p["shi"]) @ p["wi"] + p["bi"]
    return jax.nn.sigmoid((u * i) @ p["wp"] + p["bp"].reshape(1, 1))


if __name__ == "__main__":
    B, user_dim, item_dim, latent_dim = 19, 32, 48, 32   # non-multiple B on purpose

    key = jax.random.PRNGKey(0)
    k_u, k_i, k_p = jax.random.split(key, 3)
    user = jax.random.normal(k_u, (B, user_dim), jnp.float32)
    item = jax.random.normal(k_i, (B, item_dim), jnp.float32)
    params = init_params(k_p, user_dim, item_dim, latent_dim)
    fused = prepare_fused_params(params)

    ref = gmf_reference(user, item, params)

    # Default tile (clamped to the rounded-up batch) — single ragged grid step.
    out = jax.block_until_ready(gmf_forward(user, item, fused))
    assert out.shape == (B, 1)
    assert jnp.allclose(out, ref, atol=1e-5, rtol=0.0), (out, ref)

    # Small explicit tile — multi-step grid with a ragged final block.
    out2 = jax.block_until_ready(gmf_forward(user, item, fused, tb=8))
    assert out2.shape == (B, 1)
    assert jnp.allclose(out2, ref, atol=1e-5, rtol=0.0), (out2, ref)

    print("KERNEL_OK")
</pallas_src>

<mosaic_0001>
module attributes {stable_mosaic.version = 11 : i64} {
  func.func @gmf_kernel(%arg0: i32, %arg1: memref<24x32xf32, #tpu.memory_space<vmem>>, %arg2: memref<24x48xf32, #tpu.memory_space<vmem>>, %arg3: memref<32x32xf32, #tpu.memory_space<vmem>>, %arg4: memref<48x32xf32, #tpu.memory_space<vmem>>, %arg5: memref<1x32xf32, #tpu.memory_space<vmem>>, %arg6: memref<1x32xf32, #tpu.memory_space<vmem>>, %arg7: memref<1x1xf32, #tpu.memory_space<smem>>, %arg8: memref<24x1xf32, #tpu.memory_space<vmem>>) attributes {dimension_semantics = [#tpu.dimension_semantics<parallel>], iteration_bounds = array<i64: 1>, scalar_prefetch = 0 : i64, scratch_operands = 0 : i64, tpu.core_type = #tpu.core_type<tc>, window_params = [{transform_indices = @transform_0, window_bounds = array<i64: 24, 32>}, {transform_indices = @transform_1, window_bounds = array<i64: 24, 48>}, {pipeline_mode = #tpu.pipeline_mode<synchronous>, transform_indices = @transform_2, window_bounds = array<i64: 32, 32>}, {pipeline_mode = #tpu.pipeline_mode<synchronous>, transform_indices = @transform_3, window_bounds = array<i64: 48, 32>}, {pipeline_mode = #tpu.pipeline_mode<synchronous>, transform_indices = @transform_4, window_bounds = array<i64: 1, 32>}, {pipeline_mode = #tpu.pipeline_mode<synchronous>, transform_indices = @transform_5, window_bounds = array<i64: 1, 32>}, {transform_indices = @transform_6, window_bounds = array<i64: 1, 1>}, {transform_indices = @transform_7, window_bounds = array<i64: 24, 1>}]} {
    %c0 = arith.constant 0 : index
    %c0_0 = arith.constant 0 : index
    %0 = vector.load %arg1[%c0, %c0_0] : memref<24x32xf32, #tpu.memory_space<vmem>>, vector<24x32xf32>
    %c0_1 = arith.constant 0 : index
    %c0_2 = arith.constant 0 : index
    %1 = vector.load %arg3[%c0_1, %c0_2] : memref<32x32xf32, #tpu.memory_space<vmem>>, vector<32x32xf32>
    %cst = arith.constant dense<0.000000e+00> : vector<24x32xf32>
    %2 = tpu.matmul %0, %1, %cst {dimension_numbers = #tpu.dot_dimension_numbers<[1], [0], [0], [1], [0, 0, 1, 1], [], []>} : vector<24x32xf32>, vector<32x32xf32>, vector<24x32xf32> -> vector<24x32xf32>
    %c0_3 = arith.constant 0 : index
    %c0_4 = arith.constant 0 : index
    %3 = vector.load %arg5[%c0_3, %c0_4] : memref<1x32xf32, #tpu.memory_space<vmem>>, vector<1x32xf32>
    %4 = vector.broadcast %3 : vector<1x32xf32> to vector<24x32xf32>
    %5 = arith.addf %2, %4 : vector<24x32xf32>
    %c0_5 = arith.constant 0 : index
    %c0_6 = arith.constant 0 : index
    %6 = vector.load %arg2[%c0_5, %c0_6] : memref<24x48xf32, #tpu.memory_space<vmem>>, vector<24x48xf32>
    %c0_7 = arith.constant 0 : index
    %c0_8 = arith.constant 0 : index
    %7 = vector.load %arg4[%c0_7, %c0_8] : memref<48x32xf32, #tpu.memory_space<vmem>>, vector<48x32xf32>
    %cst_9 = arith.constant dense<0.000000e+00> : vector<24x32xf32>
    %8 = tpu.matmul %6, %7, %cst_9 {dimension_numbers = #tpu.dot_dimension_numbers<[1], [0], [0], [1], [0, 0, 1, 1], [], []>} : vector<24x48xf32>, vector<48x32xf32>, vector<24x32xf32> -> vector<24x32xf32>
    %c0_10 = arith.constant 0 : index
    %c0_11 = arith.constant 0 : index
    %9 = vector.load %arg6[%c0_10, %c0_11] : memref<1x32xf32, #tpu.memory_space<vmem>>, vector<1x32xf32>
    %10 = vector.broadcast %9 : vector<1x32xf32> to vector<24x32xf32>
    %11 = arith.addf %8, %10 : vector<24x32xf32>
    %12 = arith.mulf %5, %11 : vector<24x32xf32>
    %cst_12 = arith.constant 1.000000e+00 : f32
    %13 = vector.broadcast %cst_12 : f32 to vector<32x1xf32>
    %cst_13 = arith.constant dense<0.000000e+00> : vector<24x1xf32>
    %14 = tpu.matmul %12, %13, %cst_13 {dimension_numbers = #tpu.dot_dimension_numbers<[1], [0], [0], [1], [0, 0, 1, 1], [], []>} : vector<24x32xf32>, vector<32x1xf32>, vector<24x1xf32> -> vector<24x1xf32>
    %c0_14 = arith.constant 0 : index
    %c0_15 = arith.constant 0 : index
    %15 = memref.load %arg7[%c0_14, %c0_15] : memref<1x1xf32, #tpu.memory_space<smem>>
    %16 = vector.broadcast %15 : f32 to vector<24x1xf32>
    %17 = arith.addf %14, %16 : vector<24x1xf32>
    %18 = arith.negf %17 : vector<24x1xf32>
    %19 = math.exp %18 : vector<24x1xf32>
    %cst_16 = arith.constant 1.000000e+00 : f32
    %20 = vector.broadcast %cst_16 : f32 to vector<24x1xf32>
    %21 = arith.addf %20, %19 : vector<24x1xf32>
    %22 = arith.divf %20, %21 : vector<24x1xf32>
    %c0_17 = arith.constant 0 : index
    %c0_18 = arith.constant 0 : index
    %23 = vector.load %arg8[%c0_17, %c0_18] : memref<24x1xf32, #tpu.memory_space<vmem>>, vector<24x1xf32>
    tpu.vector_store %arg8[%c0_17, %c0_18], %22 {strides = array<i32>} : memref<24x1xf32, #tpu.memory_space<vmem>>, vector<24x1xf32>,
    return
  }
  func.func @transform_0(%arg0: i32) -> (i32, i32) {
    %c0_i32 = arith.constant 0 : i32
    %c0_i32_0 = arith.constant 0 : i32
    return %arg0, %c0_i32 : i32, i32
  }
  func.func @transform_1(%arg0: i32) -> (i32, i32) {
    %c0_i32 = arith.constant 0 : i32
    %c0_i32_0 = arith.constant 0 : i32
    return %arg0, %c0_i32 : i32, i32
  }
  func.func @transform_2(%arg0: i32) -> (i32, i32) {
    %c0_i32 = arith.constant 0 : i32
    %c0_i32_0 = arith.constant 0 : i32
    %c0_i32_1 = arith.constant 0 : i32
    return %c0_i32, %c0_i32_0 : i32, i32
  }
  func.func @transform_3(%arg0: i32) -> (i32, i32) {
    %c0_i32 = arith.constant 0 : i32
    %c0_i32_0 = arith.constant 0 : i32
    %c0_i32_1 = arith.constant 0 : i32
    return %c0_i32, %c0_i32_0 : i32, i32
  }
  func.func @transform_4(%arg0: i32) -> (i32, i32) {
    %c0_i32 = arith.constant 0 : i32
    %c0_i32_0 = arith.constant 0 : i32
    %c0_i32_1 = arith.constant 0 : i32
    return %c0_i32, %c0_i32_0 : i32, i32
  }
  func.func @transform_5(%arg0: i32) -> (i32, i32) {
    %c0_i32 = arith.constant 0 : i32
    %c0_i32_0 = arith.constant 0 : i32
    %c0_i32_1 = arith.constant 0 : i32
    return %c0_i32, %c0_i32_0 : i32, i32
  }
  func.func @transform_6(%arg0: i32) -> (i32, i32) {
    %c0_i32 = arith.constant 0 : i32
    %c0_i32_0 = arith.constant 0 : i32
    %c0_i32_1 = arith.constant 0 : i32
    return %c0_i32, %c0_i32_0 : i32, i32
  }
  func.func @transform_7(%arg0: i32) -> (i32, i32) {
    %c0_i32 = arith.constant 0 : i32
    %c0_i32_0 = arith.constant 0 : i32
    return %arg0, %c0_i32 : i32, i32
  }
}

</mosaic_0001>

<llo_original>
// kernel: tpu_custom_call.1
$region0: #{tpu_custom_call.1}
  #allocation0 [shape = 'u32[]', space=smem, size = 0x4, offset = 0x4, fixed_abs, tag = 'smem constant byte address 0x4 - core index']
  #allocation1 [shape = 'u32[144,128]{1,0:T(1,128)}', space=vmem, size = 0x12000, scoped, tag = 'internal scratch']
  #allocation2 [shape = 'f32[1,1]{1,0:T(1,128)S(6)}', space=smem, size = 0x200, scoped, tag = 'scoped memory for tpu_custom_call.1']
  %s0 = inlined_call_operand.vmem [shape: f32[19,32], index: 0, kind: input, shape index: {}]
  %s1 = inlined_call_operand.vmem [shape: f32[19,48], index: 1, kind: input, shape index: {}]
  %s2 = inlined_call_operand.vmem [shape: f32[32,32], index: 2, kind: input, shape index: {}]
  %s3 = inlined_call_operand.vmem [shape: f32[48,32], index: 3, kind: input, shape index: {}]
  %s4 = inlined_call_operand.vmem [shape: f32[1,32], index: 4, kind: input, shape index: {}]
  %s5 = inlined_call_operand.vmem [shape: f32[1,32], index: 5, kind: input, shape index: {}]
  %s6 = inlined_call_operand.<no memory space> [shape: f32[1,1], index: 6, kind: input, shape index: {}]
  %s7 = inlined_call_operand.vmem [shape: f32[19,1], index: 7, kind: output, shape index: {}]
  %s8 = sld [smem:[#allocation0]]
  $region38: #{tpu_custom_call.1} parent=0
    _
  %s10 = ssub.s32 1, %s8
  %s11 = scalar_select 0, %s10, %s8
  %12 = sst [smem:[#allocation2]] %s6
  // Predicated region
  $region2: #{tpu_custom_call.1} parent=0 // pred_check
    _
  $region3: #{tpu_custom_call.1} parent=0 // pred_check_branch
    %14 = sbr.rel (0) target = $region5
  $region4: #{tpu_custom_call.1} parent=0 // pred_region
    _
  $region5: #{tpu_custom_call.1} parent=0 // pred_fallthru
    _
  // Predicated region
  $region6: #{tpu_custom_call.1} parent=0 // pred_check
    _
  $region7: #{tpu_custom_call.1} parent=0 // pred_check_branch
    %16 = sbr.rel (0) target = $region9
  $region8: #{tpu_custom_call.1} parent=0 // pred_region
    _
  $region9: #{tpu_custom_call.1} parent=0 // pred_fallthru
    _
  // Predicated region
  $region10: #{tpu_custom_call.1} parent=0 // pred_check
    _
  $region11: #{tpu_custom_call.1} parent=0 // pred_check_branch
    %18 = sbr.rel (0) target = $region13
  $region12: #{tpu_custom_call.1} parent=0 // pred_region
    _
  $region13: #{tpu_custom_call.1} parent=0 // pred_fallthru
    _
  // Predicated region
  $region14: #{tpu_custom_call.1} parent=0 // pred_check
    _
  $region15: #{tpu_custom_call.1} parent=0 // pred_check_branch
    %20 = sbr.rel (0) target = $region17
  $region16: #{tpu_custom_call.1} parent=0 // pred_region
    _
  $region17: #{tpu_custom_call.1} parent=0 // pred_fallthru
    _
  // Predicated region
  $region18: #{tpu_custom_call.1} parent=0 // pred_check
    _
  $region19: #{tpu_custom_call.1} parent=0 // pred_check_branch
    %22 = sbr.rel (0) target = $region21
  $region20: #{tpu_custom_call.1} parent=0 // pred_region
    _
  $region21: #{tpu_custom_call.1} parent=0 // pred_fallthru
    _
  // Predicated region
  $region22: #{tpu_custom_call.1} parent=0 // pred_check
    _
  $region23: #{tpu_custom_call.1} parent=0 // pred_check_branch
    %24 = sbr.rel (0) target = $region25
  $region24: #{tpu_custom_call.1} parent=0 // pred_region
    _
  $region25: #{tpu_custom_call.1} parent=0 // pred_fallthru
    _
  // Predicated region
  $region26: #{tpu_custom_call.1} parent=0 // pred_check
    _
  $region27: #{tpu_custom_call.1} parent=0 // pred_check_branch
    %26 = sbr.rel (0) target = $region29
  $region28: #{tpu_custom_call.1} parent=0 // pred_region
    _
  $region29: #{tpu_custom_call.1} parent=0 // pred_fallthru
    _
  %v27 = vld [vmem:[%s0] sm:$0xff]
  %v28 = vld [vmem:[%s0 + $0x8] sm:$0xff]
  %v29 = vld [vmem:[%s0 + $0x10] sm:$0xff]
  %v30 = vld [vmem:[%s2] sm:$0xff]
  %v31 = vld [vmem:[%s2 + $0x8] sm:$0xff]
  %v32 = vld [vmem:[%s2 + $0x10] sm:$0xff]
  %v33 = vld [vmem:[%s2 + $0x18] sm:$0xff]
  %v34 = vld [vmem:[%s4] sm:$0x1]
  %v36 = vlaneseq
  %v37 = vshrl.u32 %v36, 7
  %v38 = vsub.s32 0, %v37
  %v39 = vrot.slane %v34, %v38
  %vm41 = vcmask 261120
  %v43 = vsel %vm41, %v27, 0
  %v46 = vsel %vm41, %v28, 0
  %v49 = vsel %vm41, %v29, 0
  %51 = vmatprep.subr.mxu0 0.0
  %52 = vmatpush1.msra.mxu0 %v30
  %53 = vmatprep.subr.mxu0 0.0
  %54 = vmatpush1.msra.mxu0 %v31
  %55 = vmatprep.subr.mxu0 0.0
  %56 = vmatpush1.msra.mxu0 %v32
  %57 = vmatprep.subr.mxu0 0.0
  %58 = vmatpush1.msra.mxu0 %v33
  %59 = vmatprep.subr.mxu0 0.0
  %60 = vmatpush1.msra.mxu0 0.0
  %61 = vmatprep.subr.mxu0 0.0
  %62 = vmatpush1.msra.mxu0 0.0
  %63 = vmatprep.subr.mxu0 0.0
  %64 = vmatpush1.msra.mxu0 0.0
  %65 = vmatprep.subr.mxu0 0.0
  %66 = vmatpush1.msra.mxu0 0.0
  %67 = vmatprep.subr.mxu0 0.0
  %68 = vmatpush1.msra.mxu0 0.0
  %69 = vmatprep.subr.mxu0 0.0
  %70 = vmatpush1.msra.mxu0 0.0
  %71 = vmatprep.subr.mxu0 0.0
  %72 = vmatpush1.msra.mxu0 0.0
  %73 = vmatprep.subr.mxu0 0.0
  %74 = vmatpush1.msra.mxu0 0.0
  %75 = vmatprep.subr.mxu0 0.0
  %76 = vmatpush1.msra.mxu0 0.0
  %77 = vmatprep.subr.mxu0 0.0
  %78 = vmatpush1.msra.mxu0 0.0
  %79 = vmatprep.subr.mxu0 0.0
  %80 = vmatpush1.msra.mxu0 0.0
  %81 = vmatprep.subr.mxu0 0.0
  %82 = vmatpush1.msra.mxu0 0.0
  %83 = vmatprep.subr.mxu0 0.0
  %84 = vmatpush1.msra.mxu0 0.0
  %85 = vmatprep.subr.mxu0 0.0
  %86 = vmatpush1.msra.mxu0 0.0
  %87 = vmatprep.subr.mxu0 0.0
  %88 = vmatpush1.msra.mxu0 0.0
  %89 = vmatprep.subr.mxu0 0.0
  %90 = vmatpush1.msra.mxu0 0.0
  %91 = vmatprep.subr.mxu0 0.0
  %92 = vmatpush1.msra.mxu0 0.0
  %93 = vmatprep.subr.mxu0 0.0
  %94 = vmatpush1.msra.mxu0 0.0
  %95 = vmatprep.subr.mxu0 0.0
  %96 = vmatpush1.msra.mxu0 0.0
  %97 = vmatprep.subr.mxu0 0.0
  %98 = vmatpush1.msra.mxu0 0.0
  %99 = vmatprep.subr.mxu0 0.0
  %100 = vmatpush1.msra.mxu0 0.0
  %101 = vmatprep.subr.mxu0 0.0
  %102 = vmatpush1.msra.mxu0 0.0
  %103 = vmatprep.subr.mxu0 0.0
  %104 = vmatpush1.msra.mxu0 0.0
  %105 = vmatprep.subr.mxu0 0.0
  %106 = vmatpush1.msra.mxu0 0.0
  %107 = vmatprep.subr.mxu0 0.0
  %108 = vmatpush1.msra.mxu0 0.0
  %109 = vmatprep.subr.mxu0 0.0
  %110 = vmatpush1.msra.mxu0 0.0
  %111 = vmatprep.subr.mxu0 0.0
  %112 = vmatpush1.msra.mxu0 0.0
  %113 = vmatprep.subr.mxu0 0.0
  %114 = vmatpush1.msra.mxu0 0.0
  %115 = vmatprep.mubr.f32.mxu0 0.0
  %116 = vmatmul.mubr.f32.gmra.mrb[0].mxu0 %v43
  %v117 = vpop.f32.mrb[0].mxu0
  %v118 = vadd.f32 %v39, %v117
  %v119 = vpop.f32.mrb[0].mxu0
  %120 = vmatprep.mubr.f32.mxu0 0.0
  %121 = vmatmul.mubr.f32.gmra.mrb[0].mxu0 %v46
  %v122 = vpop.f32.mrb[0].mxu0
  %v123 = vadd.f32 %v39, %v122
  %v124 = vpop.f32.mrb[0].mxu0
  %125 = vmatprep.mubr.f32.mxu0 0.0
  %126 = vmatmul.mubr.f32.gmra.mrb[0].mxu0 %v49
  %v127 = vpop.f32.mrb[0].mxu0
  %v128 = vadd.f32 %v39, %v127
  %v129 = vpop.f32.mrb[0].mxu0
  %130 = vdwg.mxu0
  %v131 = vld [vmem:[%s1] sm:$0xff]
  %v132 = vld [vmem:[%s1 + $0x8] sm:$0xff]
  %v133 = vld [vmem:[%s1 + $0x10] sm:$0xff]
  %v134 = vld [vmem:[%s3] sm:$0xff]
  %v135 = vld [vmem:[%s3 + $0x8] sm:$0xff]
  %v136 = vld [vmem:[%s3 + $0x10] sm:$0xff]
  %v137 = vld [vmem:[%s3 + $0x18] sm:$0xff]
  %v138 = vld [vmem:[%s3 + $0x20] sm:$0xff]
  %v139 = vld [vmem:[%s3 + $0x28] sm:$0xff]
  %v140 = vld [vmem:[%s5] sm:$0x1]
  %v142 = vlaneseq
  %v143 = vshrl.u32 %v142, 7
  %v144 = vsub.s32 0, %v143
  %v145 = vrot.slane %v140, %v144
  %vm147 = vcmask 392192
  %v149 = vsel %vm147, %v131, 0
  %v152 = vsel %vm147, %v132, 0
  %v155 = vsel %vm147, %v133, 0
  %157 = vmatprep.subr.mxu0 0.0
  %158 = vmatpush1.msra.mxu0 %v134
  %159 = vmatprep.subr.mxu0 0.0
  %160 = vmatpush1.msra.mxu0 %v135
  %161 = vmatprep.subr.mxu0 0.0
  %162 = vmatpush1.msra.mxu0 %v136
  %163 = vmatprep.subr.mxu0 0.0
  %164 = vmatpush1.msra.mxu0 %v137
  %165 = vmatprep.subr.mxu0 0.0
  %166 = vmatpush1.msra.mxu0 %v138
  %167 = vmatprep.subr.mxu0 0.0
  %168 = vmatpush1.msra.mxu0 %v139
  %169 = vmatprep.subr.mxu0 0.0
  %170 = vmatpush1.msra.mxu0 0.0
  %171 = vmatprep.subr.mxu0 0.0
  %172 = vmatpush1.msra.mxu0 0.0
  %173 = vmatprep.subr.mxu0 0.0
  %174 = vmatpush1.msra.mxu0 0.0
  %175 = vmatprep.subr.mxu0 0.0
  %176 = vmatpush1.msra.mxu0 0.0
  %177 = vmatprep.subr.mxu0 0.0
  %178 = vmatpush1.msra.mxu0 0.0
  %179 = vmatprep.subr.mxu0 0.0
  %180 = vmatpush1.msra.mxu0 0.0
  %181 = vmatprep.subr.mxu0 0.0
  %182 = vmatpush1.msra.mxu0 0.0
  %183 = vmatprep.subr.mxu0 0.0
  %184 = vmatpush1.msra.mxu0 0.0
  %185 = vmatprep.subr.mxu0 0.0
  %186 = vmatpush1.msra.mxu0 0.0
  %187 = vmatprep.subr.mxu0 0.0
  %188 = vmatpush1.msra.mxu0 0.0
  %189 = vmatprep.subr.mxu0 0.0
  %190 = vmatpush1.msra.mxu0 0.0
  %191 = vmatprep.subr.mxu0 0.0
  %192 = vmatpush1.msra.mxu0 0.0
  %193 = vmatprep.subr.mxu0 0.0
  %194 = vmatpush1.msra.mxu0 0.0
  %195 = vmatprep.subr.mxu0 0.0
  %196 = vmatpush1.msra.mxu0 0.0
  %197 = vmatprep.subr.mxu0 0.0
  %198 = vmatpush1.msra.mxu0 0.0
  %199 = vmatprep.subr.mxu0 0.0
  %200 = vmatpush1.msra.mxu0 0.0
  %201 = vmatprep.subr.mxu0 0.0
  %202 = vmatpush1.msra.mxu0 0.0
  %203 = vmatprep.subr.mxu0 0.0
  %204 = vmatpush1.msra.mxu0 0.0
  %205 = vmatprep.subr.mxu0 0.0
  %206 = vmatpush1.msra.mxu0 0.0
  %207 = vmatprep.subr.mxu0 0.0
  %208 = vmatpush1.msra.mxu0 0.0
  %209 = vmatprep.subr.mxu0 0.0
  %210 = vmatpush1.msra.mxu0 0.0
  %211 = vmatprep.subr.mxu0 0.0
  %212 = vmatpush1.msra.mxu0 0.0
  %213 = vmatprep.subr.mxu0 0.0
  %214 = vmatpush1.msra.mxu0 0.0
  %215 = vmatprep.subr.mxu0 0.0
  %216 = vmatpush1.msra.mxu0 0.0
  %217 = vmatprep.subr.mxu0 0.0
  %218 = vmatpush1.msra.mxu0 0.0
  %219 = vmatprep.subr.mxu0 0.0
  %220 = vmatpush1.msra.mxu0 0.0
  %221 = vmatprep.mubr.f32.mxu0 0.0
  %222 = vmatmul.mubr.f32.gmra.mrb[0].mxu0 %v149
  %v223 = vpop.f32.mrb[0].mxu0
  %v224 = vadd.f32 %v145, %v223
  %v225 = vpop.f32.mrb[0].mxu0
  %226 = vmatprep.mubr.f32.mxu0 0.0
  %227 = vmatmul.mubr.f32.gmra.mrb[0].mxu0 %v152
  %v228 = vpop.f32.mrb[0].mxu0
  %v229 = vadd.f32 %v145, %v228
  %v230 = vpop.f32.mrb[0].mxu0
  %231 = vmatprep.mubr.f32.mxu0 0.0
  %232 = vmatmul.mubr.f32.gmra.mrb[0].mxu0 %v155
  %v233 = vpop.f32.mrb[0].mxu0
  %v234 = vadd.f32 %v145, %v233
  %v235 = vpop.f32.mrb[0].mxu0
  %236 = vdwg.mxu0
  %v237 = vmul.f32 %v118, %v224
  %v238 = vmul.f32 %v123, %v229
  %v239 = vmul.f32 %v128, %v234
  %s240 = sld [smem:[#allocation2]]
  %v241 = vstv %s240
  %v243 = vsel %vm41, %v237, 0
  %v246 = vsel %vm41, %v238, 0
  %v249 = vsel %vm41, %v239, 0
  %251 = vmatprep.subr.mxu0 0.0
  %252 = vmatpush1.msra.mxu0 1.0
  %253 = vmatprep.subr.mxu0 0.0
  %254 = vmatpush1.msra.mxu0 1.0
  %255 = vmatprep.subr.mxu0 0.0
  %256 = vmatpush1.msra.mxu0 1.0
  %257 = vmatprep.subr.mxu0 0.0
  %258 = vmatpush1.msra.mxu0 1.0
  %259 = vmatprep.subr.mxu0 0.0
  %260 = vmatpush1.msra.mxu0 0.0
  %261 = vmatprep.subr.mxu0 0.0
  %262 = vmatpush1.msra.mxu0 0.0
  %263 = vmatprep.subr.mxu0 0.0
  %264 = vmatpush1.msra.mxu0 0.0
  %265 = vmatprep.subr.mxu0 0.0
  %266 = vmatpush1.msra.mxu0 0.0
  %267 = vmatprep.subr.mxu0 0.0
  %268 = vmatpush1.msra.mxu0 0.0
  %269 = vmatprep.subr.mxu0 0.0
  %270 = vmatpush1.msra.mxu0 0.0
  %271 = vmatprep.subr.mxu0 0.0
  %272 = vmatpush1.msra.mxu0 0.0
  %273 = vmatprep.subr.mxu0 0.0
  %274 = vmatpush1.msra.mxu0 0.0
  %275 = vmatprep.subr.mxu0 0.0
  %276 = vmatpush1.msra.mxu0 0.0
  %277 = vmatprep.subr.mxu0 0.0
  %278 = vmatpush1.msra.mxu0 0.0
  %279 = vmatprep.subr.mxu0 0.0
  %280 = vmatpush1.msra.mxu0 0.0
  %281 = vmatprep.subr.mxu0 0.0
  %282 = vmatpush1.msra.mxu0 0.0
  %283 = vmatprep.subr.mxu0 0.0
  %284 = vmatpush1.msra.mxu0 0.0
  %285 = vmatprep.subr.mxu0 0.0
  %286 = vmatpush1.msra.mxu0 0.0
  %287 = vmatprep.subr.mxu0 0.0
  %288 = vmatpush1.msra.mxu0 0.0
  %289 = vmatprep.subr.mxu0 0.0
  %290 = vmatpush1.msra.mxu0 0.0
  %291 = vmatprep.subr.mxu0 0.0
  %292 = vmatpush1.msra.mxu0 0.0
  %293 = vmatprep.subr.mxu0 0.0
  %294 = vmatpush1.msra.mxu0 0.0
  %295 = vmatprep.subr.mxu0 0.0
  %296 = vmatpush1.msra.mxu0 0.0
  %297 = vmatprep.subr.mxu0 0.0
  %298 = vmatpush1.msra.mxu0 0.0
  %299 = vmatprep.subr.mxu0 0.0
  %300 = vmatpush1.msra.mxu0 0.0
  %301 = vmatprep.subr.mxu0 0.0
  %302 = vmatpush1.msra.mxu0 0.0
  %303 = vmatprep.subr.mxu0 0.0
  %304 = vmatpush1.msra.mxu0 0.0
  %305 = vmatprep.subr.mxu0 0.0
  %306 = vmatpush1.msra.mxu0 0.0
  %307 = vmatprep.subr.mxu0 0.0
  %308 = vmatpush1.msra.mxu0 0.0
  %309 = vmatprep.subr.mxu0 0.0
  %310 = vmatpush1.msra.mxu0 0.0
  %311 = vmatprep.subr.mxu0 0.0
  %312 = vmatpush1.msra.mxu0 0.0
  %313 = vmatprep.subr.mxu0 0.0
  %314 = vmatpush1.msra.mxu0 0.0
  %315 = vmatprep.mubr.f32.mxu0 0.0
  %316 = vmatmul.mubr.f32.gmra.mrb[0].mxu0 %v243
  %v317 = vpop.f32.mrb[0].mxu0
  %v318 = vadd.f32 %v241, %v317
  %v319 = vpop.f32.mrb[0].mxu0
  %320 = vmatprep.mubr.f32.mxu0 0.0
  %321 = vmatmul.mubr.f32.gmra.mrb[0].mxu0 %v246
  %v322 = vpop.f32.mrb[0].mxu0
  %v323 = vadd.f32 %v241, %v322
  %v324 = vpop.f32.mrb[0].mxu0
  %325 = vmatprep.mubr.f32.mxu0 0.0
  %326 = vmatmul.mubr.f32.gmra.mrb[0].mxu0 %v249
  %v327 = vpop.f32.mrb[0].mxu0
  %v328 = vadd.f32 %v241, %v327
  %v329 = vpop.f32.mrb[0].mxu0
  %330 = vdwg.mxu0
  %v331 = vxor.u32 %v318, 2147483648
  %v332 = vxor.u32 %v323, 2147483648
  %v333 = vxor.u32 %v328, 2147483648
  %v334 = vmul.f32 %v331, 1.442695
  %v335 = vpow.pop %v334
  %v336 = vmul.f32 %v332, 1.442695
  %v337 = vpow.pop %v336
  %v338 = vmul.f32 %v333, 1.442695
  %v339 = vpow.pop %v338
  %v340 = vadd.f32 %v335, 1.0
  %v341 = vadd.f32 %v337, 1.0
  %v342 = vadd.f32 %v339, 1.0
  %v343 = vrcp.pop %v340
  %v344 = vmul.f32 1.0, %v343
  %v345 = vrcp.pop %v341
  %v346 = vmul.f32 1.0, %v345
  %v347 = vrcp.pop %v342
  %v348 = vmul.f32 1.0, %v347
  %vm349 = vcmask 7168
  %350 = vst.msk [vmem:[%s7] sm:$0xff] %vm349, %v344
  %351 = vst.msk [vmem:[%s7 + $0x8] sm:$0xff] %vm349, %v346
  %352 = vst.msk [vmem:[%s7 + $0x10] sm:$0xff] %vm349, %v348
  // Predicated region
  $region30: #{tpu_custom_call.1} parent=0 // pred_check
    _
  $region31: #{tpu_custom_call.1} parent=0 // pred_check_branch
    %354 = sbr.rel (0) target = $region33
  $region32: #{tpu_custom_call.1} parent=0 // pred_region
    _
  $region33: #{tpu_custom_call.1} parent=0 // pred_fallthru
    _
  // Predicated region
  $region34: #{tpu_custom_call.1} parent=0 // pred_check
    _
  $region35: #{tpu_custom_call.1} parent=0 // pred_check_branch
    %356 = sbr.rel (0) target = $region37
  $region36: #{tpu_custom_call.1} parent=0 // pred_region
    _
  $region37: #{tpu_custom_call.1} parent=0 // pred_fallthru
    _

</llo_original>
